<compile_context>
chip_gen: v6e
topology: v6e:2x2x1
jax: 0.10.0
libtpu: 0.0.40
codegen_flags: <defaults>
</compile_context>

<pallas_src>
import jax
import jax.numpy as jnp
import numpy as np
from jax.experimental import pallas as pl
from jax.experimental.pallas import tpu as pltpu


def _round_up(x, m):
    return ((x + m - 1) // m) * m


def _patch_encode_bd_kernel(x_ref, w_ref, pos_ref, o_ref):
    # x_ref:   (tile_b, num_patch*patch_len)
    # w_ref:   (num_patch*patch_len, num_patch*d_model)  block-diagonal W_P^T (resident)
    # pos_ref: (1, num_patch*d_model)                    W_pos + b_P, flattened (resident)
    # o_ref:   (tile_b, num_patch*d_model)               lane-dense output block
    z = jnp.dot(x_ref[...], w_ref[...], preferred_element_type=jnp.float32)
    o_ref[...] = (z + pos_ref[...]).astype(o_ref.dtype)


def _patch_encode_kernel(x_ref, w_ref, pos_ref, o_ref):
    # Fallback path (block-diagonal weight too large).
    # x_ref:   (tile_b, num_patch, patch_len)
    # w_ref:   (patch_len, d_model)
    # pos_ref: (num_patch, d_model)   W_pos + b_P (resident, constant index_map)
    # o_ref:   (tile_b, num_patch, d_model)
    z = jax.lax.dot_general(
        x_ref[...], w_ref[...],
        dimension_numbers=(((2,), (0,)), ((), ())),
        preferred_element_type=jnp.float32)
    o_ref[...] = (z + pos_ref[...][None, :, :]).astype(o_ref.dtype)


def patch_encoder_forward(x, w_p, b_p, w_pos, *, compute_dtype=None):
    """x: (bs, num_patch, n_vars, patch_len) -> (bs, n_vars, num_patch, d_model)."""
    bs, num_patch, n_vars, patch_len = x.shape
    d_model = w_p.shape[0]
    B = bs * n_vars

    in_dtype = jnp.dtype(compute_dtype) if compute_dtype is not None else jnp.dtype(x.dtype)
    out_dtype = jnp.dtype(x.dtype)
    in_bytes = in_dtype.itemsize
    out_bytes = out_dtype.itemsize

    # Match torch's transpose(1, 2) ordering up front; allow_input_fusion below lets XLA
    # fuse this transpose (and the tiny row pad) into the pallas_call's input DMA.
    xt = jnp.transpose(x, (0, 2, 1, 3))                       # (bs, n_vars, num_patch, patch_len)
    w_t = jnp.transpose(w_p).astype(jnp.float32)              # (patch_len, d_model)
    pos_b = (w_pos + b_p[None, :]).astype(jnp.float32)        # fold bias: (num_patch, d_model)

    kbd = num_patch * patch_len
    nbd = num_patch * d_model
    bd_weight_bytes = _round_up(kbd, 8) * _round_up(nbd, 128) * in_bytes
    use_block_diag = (patch_len < 128) and (bd_weight_bytes <= (8 << 20))

    # Tile budget sized so double-buffered tiles + resident weight fit every generation
    # (v5e default scoped 16 MiB is raised explicitly; v7x physical VMEM is only 64 MiB).
    tile_budget = 24 << 20

    if use_block_diag:
        kbd_pad = _round_up(kbd, 128)
        nbd_pad = _round_up(nbd, 128)
        row_in = in_bytes * kbd_pad
        row_out = out_bytes * nbd_pad
        resident = 2 * bd_weight_bytes + 2 * 8 * nbd_pad * 4   # weight + pos row (2x counted)
        per_row = 2 * (row_in + row_out)                       # double-buffered x + out tiles
        tile_b = max(8, min(2048, ((tile_budget - resident) // per_row) // 8 * 8))
        tile_b = min(tile_b, _round_up(B, 8))

        grid_m = pl.cdiv(B, tile_b)
        if grid_m > 1 and grid_m % 2 == 1:
            grid_m += 1                                        # balanced halves on dual-TC v7x
        padded_B = grid_m * tile_b

        x2 = xt.reshape(B, kbd)
        if padded_B != B:
            x2 = jnp.pad(x2, ((0, padded_B - B), (0, 0)))
        x2 = x2.astype(in_dtype)

        # Block-diagonal shared weight: out block q = x patch q @ W_P^T.
        eye = jnp.eye(num_patch, dtype=jnp.float32)
        w_bd = jnp.einsum('pq,ld->plqd', eye, w_t).reshape(kbd, nbd).astype(in_dtype)
        pos_row = pos_b.reshape(1, nbd)                        # f32 add in-kernel

        needed = resident + per_row * tile_b
        vmem_limit = int(min(48 << 20, max(needed + (4 << 20), 16 << 20)))

        cost = pl.CostEstimate(
            flops=2 * padded_B * kbd * nbd,
            transcendentals=0,
            bytes_accessed=int(in_bytes * padded_B * kbd + in_bytes * kbd * nbd
                               + 4 * nbd + out_bytes * padded_B * nbd),
        )

        out = pl.pallas_call(
            _patch_encode_bd_kernel,
            out_shape=jax.ShapeDtypeStruct((padded_B, nbd), out_dtype),
            grid_spec=pltpu.PrefetchScalarGridSpec(
                num_scalar_prefetch=0,
                grid=(grid_m,),
                in_specs=[
                    pl.BlockSpec((tile_b, kbd), lambda i: (i, 0)),
                    pl.BlockSpec((kbd, nbd), lambda i: (0, 0)),
                    pl.BlockSpec((1, nbd), lambda i: (0, 0)),
                ],
                out_specs=pl.BlockSpec((tile_b, nbd), lambda i: (i, 0)),
            ),
            compiler_params=pltpu.CompilerParams(
                dimension_semantics=("parallel",),
                allow_input_fusion=[True, False, False],
                vmem_limit_bytes=vmem_limit,
            ),
            cost_estimate=cost,
        )(x2, w_bd, pos_row)

        return out[:B].reshape(bs, n_vars, num_patch, d_model)

    # ---- Fallback: plain GEMM with 3-D blocks (used when block-diag weight too big) ----
    pl_pad = _round_up(patch_len, 128)
    dm_pad = _round_up(d_model, 128)
    np_pad = _round_up(num_patch, 8)
    row_in = in_bytes * np_pad * pl_pad
    row_out = out_bytes * np_pad * dm_pad
    resident = 2 * (_round_up(patch_len, 8) * dm_pad * in_bytes) + np_pad * dm_pad * 4
    per_row = 2 * (row_in + row_out)
    tile_b = max(1, min(512, (tile_budget - resident) // per_row))
    tile_b = min(tile_b, B)

    grid_m = pl.cdiv(B, tile_b)
    if grid_m > 1 and grid_m % 2 == 1:
        grid_m += 1
    padded_B = grid_m * tile_b

    x3 = xt.reshape(B, num_patch, patch_len)
    if padded_B != B:
        x3 = jnp.pad(x3, ((0, padded_B - B), (0, 0), (0, 0)))
    x3 = x3.astype(in_dtype)
    w_in = w_t.astype(in_dtype)

    needed = resident + per_row * tile_b
    vmem_limit = int(min(48 << 20, max(needed + (4 << 20), 16 << 20)))

    cost = pl.CostEstimate(
        flops=2 * padded_B * num_patch * patch_len * d_model,
        transcendentals=0,
        bytes_accessed=int(in_bytes * padded_B * num_patch * patch_len
                           + in_bytes * patch_len * d_model
                           + 4 * num_patch * d_model
                           + out_bytes * padded_B * num_patch * d_model),
    )

    out = pl.pallas_call(
        _patch_encode_kernel,
        out_shape=jax.ShapeDtypeStruct((padded_B, num_patch, d_model), out_dtype),
        grid_spec=pltpu.PrefetchScalarGridSpec(
            num_scalar_prefetch=0,
            grid=(grid_m,),
            in_specs=[
                pl.BlockSpec((tile_b, num_patch, patch_len), lambda i: (i, 0, 0)),
                pl.BlockSpec((patch_len, d_model), lambda i: (0, 0)),
                pl.BlockSpec((num_patch, d_model), lambda i: (0, 0)),
            ],
            out_specs=pl.BlockSpec((tile_b, num_patch, d_model), lambda i: (i, 0, 0)),
        ),
        compiler_params=pltpu.CompilerParams(
            dimension_semantics=("parallel",),
            allow_input_fusion=[True, False, False],
            vmem_limit_bytes=vmem_limit,
        ),
        cost_estimate=cost,
    )(x3, w_in, pos_b)

    return out[:B].reshape(bs, n_vars, num_patch, d_model)


def init_params(key, patch_len, d_model, num_patch):
    """Deterministic synthetic parameters matching the module's shapes.

    nn.Linear(patch_len, d_model): weight (d_model, patch_len), bias (d_model,),
    both uniform(-1/sqrt(patch_len), 1/sqrt(patch_len)).
    positional_encoding(pe='zeros', ...): W_pos (num_patch, d_model), uniform(-0.02, 0.02).
    """
    k_w, k_b, k_pos = jax.random.split(key, 3)
    bound = 1.0 / np.sqrt(patch_len)
    w_p = jax.random.uniform(k_w, (d_model, patch_len), jnp.float32, -bound, bound)
    b_p = jax.random.uniform(k_b, (d_model,), jnp.float32, -bound, bound)
    w_pos = jax.random.uniform(k_pos, (num_patch, d_model), jnp.float32, -0.02, 0.02)
    return w_p, b_p, w_pos


if __name__ == "__main__":
    # Small shapes consistent with the module's forward.
    bs, num_patch, n_vars, patch_len = 2, 8, 4, 16
    d_model = 32

    key = jax.random.PRNGKey(0)
    k_x, k_p = jax.random.split(key)
    x = jax.random.normal(k_x, (bs, num_patch, n_vars, patch_len), jnp.float32)
    w_p, b_p, w_pos = init_params(k_p, patch_len, d_model, num_patch)

    z = patch_encoder_forward(x, w_p, b_p, w_pos)
    z = jax.block_until_ready(z)

    # Pure-JAX reference of the same forward semantics (sanity check).
    ref = x.reshape(-1, patch_len) @ w_p.T + b_p
    ref = ref.reshape(bs, num_patch, n_vars, d_model)
    ref = jnp.transpose(ref, (0, 2, 1, 3)).reshape(bs * n_vars, num_patch, d_model)
    ref = (ref + w_pos).reshape(bs, n_vars, num_patch, d_model)

    assert z.shape == (bs, n_vars, num_patch, d_model), z.shape
    np.testing.assert_allclose(np.asarray(z), np.asarray(ref), rtol=1e-5, atol=1e-5)

    print("KERNEL_OK")
</pallas_src>

<mosaic_0001>
module attributes {stable_mosaic.version = 11 : i64} {
  func.func @_patch_encode_bd_kernel(%arg0: i32, %arg1: memref<8x128xf32, #tpu.memory_space<vmem>>, %arg2: memref<128x256xf32, #tpu.memory_space<vmem>>, %arg3: memref<1x256xf32, #tpu.memory_space<vmem>>, %arg4: memref<8x256xf32, #tpu.memory_space<vmem>>) attributes {dimension_semantics = [#tpu.dimension_semantics<parallel>], iteration_bounds = array<i64: 1>, scalar_prefetch = 0 : i64, scratch_operands = 0 : i64, tpu.core_type = #tpu.core_type<tc>, window_params = [{transform_indices = @transform_0, window_bounds = array<i64: 8, 128>}, {pipeline_mode = #tpu.pipeline_mode<synchronous>, transform_indices = @transform_1, window_bounds = array<i64: 128, 256>}, {pipeline_mode = #tpu.pipeline_mode<synchronous>, transform_indices = @transform_2, window_bounds = array<i64: 1, 256>}, {transform_indices = @transform_3, window_bounds = array<i64: 8, 256>}]} {
    %c0 = arith.constant 0 : index
    %c0_0 = arith.constant 0 : index
    %0 = vector.load %arg1[%c0, %c0_0] : memref<8x128xf32, #tpu.memory_space<vmem>>, vector<8x128xf32>
    %c0_1 = arith.constant 0 : index
    %c0_2 = arith.constant 0 : index
    %1 = vector.load %arg2[%c0_1, %c0_2] : memref<128x256xf32, #tpu.memory_space<vmem>>, vector<128x256xf32>
    %cst = arith.constant dense<0.000000e+00> : vector<8x256xf32>
    %2 = tpu.matmul %0, %1, %cst {dimension_numbers = #tpu.dot_dimension_numbers<[1], [0], [0], [1], [0, 0, 1, 1], [], []>} : vector<8x128xf32>, vector<128x256xf32>, vector<8x256xf32> -> vector<8x256xf32>
    %c0_3 = arith.constant 0 : index
    %c0_4 = arith.constant 0 : index
    %3 = vector.load %arg3[%c0_3, %c0_4] : memref<1x256xf32, #tpu.memory_space<vmem>>, vector<1x256xf32>
    %4 = vector.broadcast %3 : vector<1x256xf32> to vector<8x256xf32>
    %5 = arith.addf %2, %4 : vector<8x256xf32>
    %c0_5 = arith.constant 0 : index
    %c0_6 = arith.constant 0 : index
    %6 = vector.load %arg4[%c0_5, %c0_6] : memref<8x256xf32, #tpu.memory_space<vmem>>, vector<8x256xf32>
    tpu.vector_store %arg4[%c0_5, %c0_6], %5 {strides = array<i32>} : memref<8x256xf32, #tpu.memory_space<vmem>>, vector<8x256xf32>,
    return
  }
  func.func @transform_0(%arg0: i32) -> (i32, i32) {
    %c0_i32 = arith.constant 0 : i32
    %c0_i32_0 = arith.constant 0 : i32
    return %arg0, %c0_i32 : i32, i32
  }
  func.func @transform_1(%arg0: i32) -> (i32, i32) {
    %c0_i32 = arith.constant 0 : i32
    %c0_i32_0 = arith.constant 0 : i32
    %c0_i32_1 = arith.constant 0 : i32
    return %c0_i32, %c0_i32_0 : i32, i32
  }
  func.func @transform_2(%arg0: i32) -> (i32, i32) {
    %c0_i32 = arith.constant 0 : i32
    %c0_i32_0 = arith.constant 0 : i32
    %c0_i32_1 = arith.constant 0 : i32
    return %c0_i32, %c0_i32_0 : i32, i32
  }
  func.func @transform_3(%arg0: i32) -> (i32, i32) {
    %c0_i32 = arith.constant 0 : i32
    %c0_i32_0 = arith.constant 0 : i32
    return %arg0, %c0_i32 : i32, i32
  }
}

</mosaic_0001>

<llo_original>
// kernel: tpu_custom_call.1
$region0: #{tpu_custom_call.1}
  #allocation0 [shape = 'u32[]', space=smem, size = 0x4, offset = 0x4, fixed_abs, tag = 'smem constant byte address 0x4 - core index']
  #allocation1 [shape = 'u32[144,128]{1,0:T(1,128)}', space=vmem, size = 0x12000, scoped, tag = 'internal scratch']
  %s0 = inlined_call_operand.hbm [shape: f32[8,128], index: 0, kind: input, shape index: {}]
  %s1 = inlined_call_operand.hbm [shape: f32[128,256], index: 1, kind: input, shape index: {}]
  %s2 = inlined_call_operand.vmem [shape: f32[1,256], index: 2, kind: input, shape index: {}]
  %s3 = inlined_call_operand.hbm [shape: f32[8,256], index: 3, kind: output, shape index: {}]
  %s4 = sld [smem:[#allocation0]]
  $region30: #{tpu_custom_call.1} parent=0
    _
  %s6 = ssub.s32 1, %s4
  %s7 = scalar_select 0, %s6, %s4
  $region1: #{tpu_custom_call.1} parent=0
    #allocation2 [shape = 'u8[4096]{0}', space=vmem, size = 0x1000, scoped, tag = 'input window, operand 0, single buffered']
    #allocation3 [shape = 's32[1]{0}', space=sflag, size = 0x4, scoped, tag = 'scoped memory for tpu_custom_call.1']
    #allocation4 [shape = 's32[1]{0}', space=sflag, size = 0x4, scoped, tag = 'scoped memory for tpu_custom_call.1']
    #allocation5 [shape = 'u8[131072]{0}', space=vmem, size = 0x20000, scoped, tag = 'input window, operand 1, single buffered']
    #allocation6 [shape = 's32[1]{0}', space=sflag, size = 0x4, scoped, tag = 'scoped memory for tpu_custom_call.1']
    #allocation7 [shape = 'u8[8192]{0}', space=vmem, size = 0x2000, scoped, tag = 'output window, operand 0, single buffered']
    %8 = vsyncpa [#allocation3], 0
    %9 = vsyncpa [#allocation6], 0
    %10 = vsyncpa [#allocation4], 0
    // Predicated region
    $region2: #{tpu_custom_call.1} parent=1 // pred_check
      _
    $region3: #{tpu_custom_call.1} parent=1 // pred_check_branch
      %12 = sbr.rel (0) target = $region5
    $region4: #{tpu_custom_call.1} parent=1 // pred_region
      %s14 = ssub.s32 128, 128
      %15 = vsyncadd [#allocation3], %s14
      %s17 = sshll.u32 [#allocation2], 4
      %s18 = int_to_ptr.vmem [resolvable:$true] %s17
      %20 = dma.hbm_to_vmem [thread:$0]  %s0, 128, %s18, [#allocation3]
    $region5: #{tpu_custom_call.1} parent=1 // pred_fallthru
      _
    // Predicated region
    $region6: #{tpu_custom_call.1} parent=1 // pred_check
      _
    $region7: #{tpu_custom_call.1} parent=1 // pred_check_branch
      %22 = sbr.rel (0) target = $region9
    $region8: #{tpu_custom_call.1} parent=1 // pred_region
      %s24 = ssub.s32 4096, 4096
      %25 = vsyncadd [#allocation6], %s24
      %s26 = sshll.u32 [#allocation5], 4
      %s27 = int_to_ptr.vmem [resolvable:$true] %s26
      %32 = dma.hbm_to_vmem [thread:$0]  %s1, 4096, %s27, [#allocation6], 256, 256, 16
    $region9: #{tpu_custom_call.1} parent=1 // pred_fallthru
      _
    // Predicated region
    $region10: #{tpu_custom_call.1} parent=1 // pred_check
      _
    $region11: #{tpu_custom_call.1} parent=1 // pred_check_branch
      %34 = sbr.rel (0) target = $region13
    $region12: #{tpu_custom_call.1} parent=1 // pred_region
      _
    $region13: #{tpu_custom_call.1} parent=1 // pred_fallthru
      _
    // Predicated region
    $region14: #{tpu_custom_call.1} parent=1 // pred_check
      _
    $region15: #{tpu_custom_call.1} parent=1 // pred_check_branch
      %36 = sbr.rel (0) target = $region17
    $region16: #{tpu_custom_call.1} parent=1 // pred_region
      %37 = dma.done [#allocation3], 128
    $region17: #{tpu_custom_call.1} parent=1 // pred_fallthru
      _
    // Predicated region
    $region18: #{tpu_custom_call.1} parent=1 // pred_check
      _
    $region19: #{tpu_custom_call.1} parent=1 // pred_check_branch
      %39 = sbr.rel (0) target = $region21
    $region20: #{tpu_custom_call.1} parent=1 // pred_region
      %40 = dma.done [#allocation6], 4096
    $region21: #{tpu_custom_call.1} parent=1 // pred_fallthru
      _
    %v41 = vld [vmem:[#allocation2] sm:$0xff]
    %v42 = vld [vmem:[#allocation5] sm:$0xff]
    %v43 = vld [vmem:[#allocation5 + $0x8] sm:$0xff]
    %v44 = vld [vmem:[#allocation5 + $0x10] sm:$0xff]
    %v45 = vld [vmem:[#allocation5 + $0x18] sm:$0xff]
    %v46 = vld [vmem:[#allocation5 + $0x20] sm:$0xff]
    %v47 = vld [vmem:[#allocation5 + $0x28] sm:$0xff]
    %v48 = vld [vmem:[#allocation5 + $0x30] sm:$0xff]
    %v49 = vld [vmem:[#allocation5 + $0x38] sm:$0xff]
    %v50 = vld [vmem:[#allocation5 + $0x40] sm:$0xff]
    %v51 = vld [vmem:[#allocation5 + $0x48] sm:$0xff]
    %v52 = vld [vmem:[#allocation5 + $0x50] sm:$0xff]
    %v53 = vld [vmem:[#allocation5 + $0x58] sm:$0xff]
    %v54 = vld [vmem:[#allocation5 + $0x60] sm:$0xff]
    %v55 = vld [vmem:[#allocation5 + $0x68] sm:$0xff]
    %v56 = vld [vmem:[#allocation5 + $0x70] sm:$0xff]
    %v57 = vld [vmem:[#allocation5 + $0x78] sm:$0xff]
    %v58 = vld [vmem:[#allocation5 + $0x80] sm:$0xff]
    %v59 = vld [vmem:[#allocation5 + $0x88] sm:$0xff]
    %v60 = vld [vmem:[#allocation5 + $0x90] sm:$0xff]
    %v61 = vld [vmem:[#allocation5 + $0x98] sm:$0xff]
    %v62 = vld [vmem:[#allocation5 + $0xa0] sm:$0xff]
    %v63 = vld [vmem:[#allocation5 + $0xa8] sm:$0xff]
    %v64 = vld [vmem:[#allocation5 + $0xb0] sm:$0xff]
    %v65 = vld [vmem:[#allocation5 + $0xb8] sm:$0xff]
    %v66 = vld [vmem:[#allocation5 + $0xc0] sm:$0xff]
    %v67 = vld [vmem:[#allocation5 + $0xc8] sm:$0xff]
    %v68 = vld [vmem:[#allocation5 + $0xd0] sm:$0xff]
    %v69 = vld [vmem:[#allocation5 + $0xd8] sm:$0xff]
    %v70 = vld [vmem:[#allocation5 + $0xe0] sm:$0xff]
    %v71 = vld [vmem:[#allocation5 + $0xe8] sm:$0xff]
    %v72 = vld [vmem:[#allocation5 + $0xf0] sm:$0xff]
    %v73 = vld [vmem:[#allocation5 + $0xf8] sm:$0xff]
    %v74 = vld [vmem:[%s2] sm:$0x3]
    %v76 = vlaneseq
    %v77 = vshrl.u32 %v76, 7
    %v78 = vsub.s32 0, %v77
    %v79 = vrot.slane %v74, %v78
    %v80 = vlaneseq
    %v81 = vshrl.u32 %v80, 7
    %v82 = vsub.s32 1, %v81
    %v83 = vrot.slane %v74, %v82
    %86 = vmatprep.subr.mxu0 %v73
    %87 = vmatpush1.msra.mxu0 %v72
    %88 = vmatprep.subr.mxu0 %v71
    %89 = vmatpush1.msra.mxu0 %v70
    %90 = vmatprep.subr.mxu0 %v69
    %91 = vmatpush1.msra.mxu0 %v68
    %92 = vmatprep.subr.mxu0 %v67
    %93 = vmatpush1.msra.mxu0 %v66
    %94 = vmatprep.subr.mxu0 %v65
    %95 = vmatpush1.msra.mxu0 %v64
    %96 = vmatprep.subr.mxu0 %v63
    %97 = vmatpush1.msra.mxu0 %v62
    %98 = vmatprep.subr.mxu0 %v61
    %99 = vmatpush1.msra.mxu0 %v60
    %100 = vmatprep.subr.mxu0 %v59
    %101 = vmatpush1.msra.mxu0 %v58
    %102 = vmatprep.subr.mxu0 %v57
    %103 = vmatpush1.msra.mxu0 %v56
    %104 = vmatprep.subr.mxu0 %v55
    %105 = vmatpush1.msra.mxu0 %v54
    %106 = vmatprep.subr.mxu0 %v53
    %107 = vmatpush1.msra.mxu0 %v52
    %108 = vmatprep.subr.mxu0 %v51
    %109 = vmatpush1.msra.mxu0 %v50
    %110 = vmatprep.subr.mxu0 %v49
    %111 = vmatpush1.msra.mxu0 %v48
    %112 = vmatprep.subr.mxu0 %v47
    %113 = vmatpush1.msra.mxu0 %v46
    %114 = vmatprep.subr.mxu0 %v45
    %115 = vmatpush1.msra.mxu0 %v44
    %116 = vmatprep.subr.mxu0 %v43
    %117 = vmatpush1.msra.mxu0 %v42
    %118 = vmatprep.subr.mxu0 0.0
    %119 = vmatpush2.msra.mxu0 0.0
    %120 = vmatprep.subr.mxu0 0.0
    %121 = vmatpush2.msra.mxu0 0.0
    %122 = vmatprep.subr.mxu0 0.0
    %123 = vmatpush2.msra.mxu0 0.0
    %124 = vmatprep.subr.mxu0 0.0
    %125 = vmatpush2.msra.mxu0 0.0
    %126 = vmatprep.subr.mxu0 0.0
    %127 = vmatpush2.msra.mxu0 0.0
    %128 = vmatprep.subr.mxu0 0.0
    %129 = vmatpush2.msra.mxu0 0.0
    %130 = vmatprep.subr.mxu0 0.0
    %131 = vmatpush2.msra.mxu0 0.0
    %132 = vmatprep.subr.mxu0 0.0
    %133 = vmatpush2.msra.mxu0 0.0
    %134 = vmatprep.subr.mxu0 0.0
    %135 = vmatpush2.msra.mxu0 0.0
    %136 = vmatprep.subr.mxu0 0.0
    %137 = vmatpush2.msra.mxu0 0.0
    %138 = vmatprep.subr.mxu0 0.0
    %139 = vmatpush2.msra.mxu0 0.0
    %140 = vmatprep.subr.mxu0 0.0
    %141 = vmatpush2.msra.mxu0 0.0
    %142 = vmatprep.subr.mxu0 0.0
    %143 = vmatpush2.msra.mxu0 0.0
    %144 = vmatprep.subr.mxu0 0.0
    %145 = vmatpush2.msra.mxu0 0.0
    %146 = vmatprep.subr.mxu0 0.0
    %147 = vmatpush2.msra.mxu0 0.0
    %148 = vmatprep.subr.mxu0 0.0
    %149 = vmatpush2.msra.mxu0 0.0
    %150 = vmatprep.mubr.f32.mxu0 0.0
    %151 = vmatmul.mubr.f32.gmra.mxu0 %v41
    %v152 = vpop.f32.mrf.mxu0
    %v153 = vadd.f32 %v79, %v152
    %v154 = vpop.f32.mrf.mxu0
    %v155 = vadd.f32 %v83, %v154
    %156 = vdwg.mxu0
    %157 = vst [vmem:[#allocation7] sm:$0xff] %v153
    %158 = vst [vmem:[#allocation7 + $0x8] sm:$0xff] %v155
    // Predicated region
    $region22: #{tpu_custom_call.1} parent=1 // pred_check
      _
    $region23: #{tpu_custom_call.1} parent=1 // pred_check_branch
      %160 = sbr.rel (0) target = $region25
    $region24: #{tpu_custom_call.1} parent=1 // pred_region
      %s162 = ssub.s32 256, 256
      %163 = vsyncadd [#allocation4], %s162
      %s165 = sshll.u32 [#allocation7], 4
      %s166 = int_to_ptr.vmem [resolvable:$true] %s165
      %168 = dma.vmem_to_hbm [thread:$0]  %s166, 256, %s3, [#allocation4]
    $region25: #{tpu_custom_call.1} parent=1 // pred_fallthru
      _
    // Predicated region
    $region26: #{tpu_custom_call.1} parent=1 // pred_check
      _
    $region27: #{tpu_custom_call.1} parent=1 // pred_check_branch
      %170 = sbr.rel (0) target = $region29
    $region28: #{tpu_custom_call.1} parent=1 // pred_region
      %171 = dma.done [#allocation4], 256
    $region29: #{tpu_custom_call.1} parent=1 // pred_fallthru
      _
    %172 = vsyncpa [#allocation3], 1
    %173 = vsyncpa [#allocation6], 1
    %174 = vsyncpa [#allocation4], 1

</llo_original>
